<compile_context>
chip_gen: v6e
topology: v6e:2x2x1
jax: 0.10.0
libtpu: 0.0.40
codegen_flags: <defaults>
</compile_context>

<pallas_src>
import jax
import jax.numpy as jnp
from jax.experimental import pallas as pl
from jax.experimental.pallas import tpu as pltpu


def _conv1x1_kernel(w_ref, x_ref, o_ref):
    # w_ref: SMEM (C_out*C_in,) f32 scalars
    # x_ref: VMEM (C_in, N*L) f32
    # o_ref: VMEM (C_out, N*L)
    c_in = x_ref.shape[0]
    c_out = o_ref.shape[0]

    x = x_ref[...]  # (C_in, NL), single full-tile load

    rows = []
    for o in range(c_out):  # static, fully unrolled (C_out*C_in = 16 FMAs)
        acc = w_ref[o * c_in + 0] * x[0:1, :]
        for c in range(1, c_in):
            acc = acc + w_ref[o * c_in + c] * x[c : c + 1, :]
        rows.append(acc)

    # one full-tile store (lane-dense last dim), no per-row partial stores
    o_ref[...] = jnp.concatenate(rows, axis=0).astype(o_ref.dtype)


def single_conv(x, weight):
    """x: (N, C_in, L) float32, weight: (C_out, C_in, 1) float32 -> (N, C_out, L)."""
    n, c_in, length = x.shape
    c_out = weight.shape[0]

    # kernel_size == 1: flatten weights to 16 scalars for SMEM residence (glue)
    w_flat = weight.reshape(c_out * c_in)

    # lane-dense layout: put all of N*L on the last (lane) axis (glue, outside kernel)
    x2d = jnp.transpose(x, (1, 0, 2)).reshape(c_in, n * length)

    y2d = pl.pallas_call(
        _conv1x1_kernel,
        out_shape=jax.ShapeDtypeStruct((c_out, n * length), x.dtype),
        grid_spec=pltpu.PrefetchScalarGridSpec(
            num_scalar_prefetch=0,
            grid=(1,),  # single step: whole problem fits in a fraction of VMEM
            in_specs=[
                # 16 f32 scalars live in SMEM and feed the VPU broadcast path
                pl.BlockSpec(memory_space=pltpu.MemorySpace.SMEM),
                # full-extent block (satisfies the (8,128) rule via full-array exception)
                pl.BlockSpec((c_in, n * length), lambda i: (0, 0)),
            ],
            out_specs=pl.BlockSpec((c_out, n * length), lambda i: (0, 0)),
        ),
        compiler_params=pltpu.CompilerParams(
            dimension_semantics=("arbitrary",),
        ),
    )(w_flat, x2d)

    # restore PyTorch NCL layout outside the kernel (glue)
    return jnp.transpose(y2d.reshape(c_out, n, length), (1, 0, 2))


if __name__ == "__main__":
    # Module config (synthetic, deterministic): channel=4, kernel is a
    # (C_out=4, C_in=4) float matrix -> weight (4, 4, 1) after unsqueeze(2).
    N, C_IN, C_OUT, L = 2, 4, 4, 16

    key = jax.random.PRNGKey(0)
    kx, kw = jax.random.split(key)
    x = jax.random.normal(kx, (N, C_IN, L), dtype=jnp.float32)
    kernel_mat = jax.random.normal(kw, (C_OUT, C_IN), dtype=jnp.float32)
    weight = kernel_mat[:, :, None]  # == torch kernel.unsqueeze(2)

    y = single_conv(x, weight)
    y = jax.block_until_ready(y)

    # Reference check against plain-JAX equivalent of conv1d with kernel_size=1.
    y_ref = jnp.einsum("oc,ncl->nol", kernel_mat, x)
    assert y.shape == (N, C_OUT, L)
    assert jnp.allclose(y, y_ref, atol=1e-5, rtol=1e-5)

    print("KERNEL_OK")
</pallas_src>

<mosaic_0001>
module attributes {stable_mosaic.version = 11 : i64} {
  func.func @_conv1x1_kernel(%arg0: i32, %arg1: memref<16xf32, #tpu.memory_space<smem>>, %arg2: memref<4x32xf32, #tpu.memory_space<vmem>>, %arg3: memref<4x32xf32, #tpu.memory_space<vmem>>) attributes {dimension_semantics = [#tpu.dimension_semantics<arbitrary>], iteration_bounds = array<i64: 1>, scalar_prefetch = 0 : i64, scratch_operands = 0 : i64, tpu.core_type = #tpu.core_type<tc>, window_params = [{transform_indices = @transform_0, window_bounds = array<i64: 16>}, {pipeline_mode = #tpu.pipeline_mode<synchronous>, transform_indices = @transform_1, window_bounds = array<i64: 4, 32>}, {pipeline_mode = #tpu.pipeline_mode<synchronous>, transform_indices = @transform_2, window_bounds = array<i64: 4, 32>}]} {
    %c0 = arith.constant 0 : index
    %c0_0 = arith.constant 0 : index
    %0 = vector.load %arg2[%c0, %c0_0] : memref<4x32xf32, #tpu.memory_space<vmem>>, vector<4x32xf32>
    %c0_1 = arith.constant 0 : index
    %1 = memref.load %arg1[%c0_1] : memref<16xf32, #tpu.memory_space<smem>>
    %2 = vector.extract_strided_slice %0 {offsets = [0, 0], sizes = [1, 32], strides = [1, 1]} : vector<4x32xf32> to vector<1x32xf32>
    %3 = vector.broadcast %1 : f32 to vector<1x32xf32>
    %4 = arith.mulf %3, %2 : vector<1x32xf32>
    %c1 = arith.constant 1 : index
    %5 = memref.load %arg1[%c1] : memref<16xf32, #tpu.memory_space<smem>>
    %6 = vector.extract_strided_slice %0 {offsets = [1, 0], sizes = [1, 32], strides = [1, 1]} : vector<4x32xf32> to vector<1x32xf32>
    %7 = vector.broadcast %5 : f32 to vector<1x32xf32>
    %8 = arith.mulf %7, %6 : vector<1x32xf32>
    %9 = arith.addf %4, %8 : vector<1x32xf32>
    %c2 = arith.constant 2 : index
    %10 = memref.load %arg1[%c2] : memref<16xf32, #tpu.memory_space<smem>>
    %11 = vector.extract_strided_slice %0 {offsets = [2, 0], sizes = [1, 32], strides = [1, 1]} : vector<4x32xf32> to vector<1x32xf32>
    %12 = vector.broadcast %10 : f32 to vector<1x32xf32>
    %13 = arith.mulf %12, %11 : vector<1x32xf32>
    %14 = arith.addf %9, %13 : vector<1x32xf32>
    %c3 = arith.constant 3 : index
    %15 = memref.load %arg1[%c3] : memref<16xf32, #tpu.memory_space<smem>>
    %16 = vector.extract_strided_slice %0 {offsets = [3, 0], sizes = [1, 32], strides = [1, 1]} : vector<4x32xf32> to vector<1x32xf32>
    %17 = vector.broadcast %15 : f32 to vector<1x32xf32>
    %18 = arith.mulf %17, %16 : vector<1x32xf32>
    %19 = arith.addf %14, %18 : vector<1x32xf32>
    %c4 = arith.constant 4 : index
    %20 = memref.load %arg1[%c4] : memref<16xf32, #tpu.memory_space<smem>>
    %21 = vector.extract_strided_slice %0 {offsets = [0, 0], sizes = [1, 32], strides = [1, 1]} : vector<4x32xf32> to vector<1x32xf32>
    %22 = vector.broadcast %20 : f32 to vector<1x32xf32>
    %23 = arith.mulf %22, %21 : vector<1x32xf32>
    %c5 = arith.constant 5 : index
    %24 = memref.load %arg1[%c5] : memref<16xf32, #tpu.memory_space<smem>>
    %25 = vector.extract_strided_slice %0 {offsets = [1, 0], sizes = [1, 32], strides = [1, 1]} : vector<4x32xf32> to vector<1x32xf32>
    %26 = vector.broadcast %24 : f32 to vector<1x32xf32>
    %27 = arith.mulf %26, %25 : vector<1x32xf32>
    %28 = arith.addf %23, %27 : vector<1x32xf32>
    %c6 = arith.constant 6 : index
    %29 = memref.load %arg1[%c6] : memref<16xf32, #tpu.memory_space<smem>>
    %30 = vector.extract_strided_slice %0 {offsets = [2, 0], sizes = [1, 32], strides = [1, 1]} : vector<4x32xf32> to vector<1x32xf32>
    %31 = vector.broadcast %29 : f32 to vector<1x32xf32>
    %32 = arith.mulf %31, %30 : vector<1x32xf32>
    %33 = arith.addf %28, %32 : vector<1x32xf32>
    %c7 = arith.constant 7 : index
    %34 = memref.load %arg1[%c7] : memref<16xf32, #tpu.memory_space<smem>>
    %35 = vector.extract_strided_slice %0 {offsets = [3, 0], sizes = [1, 32], strides = [1, 1]} : vector<4x32xf32> to vector<1x32xf32>
    %36 = vector.broadcast %34 : f32 to vector<1x32xf32>
    %37 = arith.mulf %36, %35 : vector<1x32xf32>
    %38 = arith.addf %33, %37 : vector<1x32xf32>
    %c8 = arith.constant 8 : index
    %39 = memref.load %arg1[%c8] : memref<16xf32, #tpu.memory_space<smem>>
    %40 = vector.extract_strided_slice %0 {offsets = [0, 0], sizes = [1, 32], strides = [1, 1]} : vector<4x32xf32> to vector<1x32xf32>
    %41 = vector.broadcast %39 : f32 to vector<1x32xf32>
    %42 = arith.mulf %41, %40 : vector<1x32xf32>
    %c9 = arith.constant 9 : index
    %43 = memref.load %arg1[%c9] : memref<16xf32, #tpu.memory_space<smem>>
    %44 = vector.extract_strided_slice %0 {offsets = [1, 0], sizes = [1, 32], strides = [1, 1]} : vector<4x32xf32> to vector<1x32xf32>
    %45 = vector.broadcast %43 : f32 to vector<1x32xf32>
    %46 = arith.mulf %45, %44 : vector<1x32xf32>
    %47 = arith.addf %42, %46 : vector<1x32xf32>
    %c10 = arith.constant 10 : index
    %48 = memref.load %arg1[%c10] : memref<16xf32, #tpu.memory_space<smem>>
    %49 = vector.extract_strided_slice %0 {offsets = [2, 0], sizes = [1, 32], strides = [1, 1]} : vector<4x32xf32> to vector<1x32xf32>
    %50 = vector.broadcast %48 : f32 to vector<1x32xf32>
    %51 = arith.mulf %50, %49 : vector<1x32xf32>
    %52 = arith.addf %47, %51 : vector<1x32xf32>
    %c11 = arith.constant 11 : index
    %53 = memref.load %arg1[%c11] : memref<16xf32, #tpu.memory_space<smem>>
    %54 = vector.extract_strided_slice %0 {offsets = [3, 0], sizes = [1, 32], strides = [1, 1]} : vector<4x32xf32> to vector<1x32xf32>
    %55 = vector.broadcast %53 : f32 to vector<1x32xf32>
    %56 = arith.mulf %55, %54 : vector<1x32xf32>
    %57 = arith.addf %52, %56 : vector<1x32xf32>
    %c12 = arith.constant 12 : index
    %58 = memref.load %arg1[%c12] : memref<16xf32, #tpu.memory_space<smem>>
    %59 = vector.extract_strided_slice %0 {offsets = [0, 0], sizes = [1, 32], strides = [1, 1]} : vector<4x32xf32> to vector<1x32xf32>
    %60 = vector.broadcast %58 : f32 to vector<1x32xf32>
    %61 = arith.mulf %60, %59 : vector<1x32xf32>
    %c13 = arith.constant 13 : index
    %62 = memref.load %arg1[%c13] : memref<16xf32, #tpu.memory_space<smem>>
    %63 = vector.extract_strided_slice %0 {offsets = [1, 0], sizes = [1, 32], strides = [1, 1]} : vector<4x32xf32> to vector<1x32xf32>
    %64 = vector.broadcast %62 : f32 to vector<1x32xf32>
    %65 = arith.mulf %64, %63 : vector<1x32xf32>
    %66 = arith.addf %61, %65 : vector<1x32xf32>
    %c14 = arith.constant 14 : index
    %67 = memref.load %arg1[%c14] : memref<16xf32, #tpu.memory_space<smem>>
    %68 = vector.extract_strided_slice %0 {offsets = [2, 0], sizes = [1, 32], strides = [1, 1]} : vector<4x32xf32> to vector<1x32xf32>
    %69 = vector.broadcast %67 : f32 to vector<1x32xf32>
    %70 = arith.mulf %69, %68 : vector<1x32xf32>
    %71 = arith.addf %66, %70 : vector<1x32xf32>
    %c15 = arith.constant 15 : index
    %72 = memref.load %arg1[%c15] : memref<16xf32, #tpu.memory_space<smem>>
    %73 = vector.extract_strided_slice %0 {offsets = [3, 0], sizes = [1, 32], strides = [1, 1]} : vector<4x32xf32> to vector<1x32xf32>
    %74 = vector.broadcast %72 : f32 to vector<1x32xf32>
    %75 = arith.mulf %74, %73 : vector<1x32xf32>
    %76 = arith.addf %71, %75 : vector<1x32xf32>
    %77 = tpu.concatenate %19, %38, %57, %76 in 0 : vector<1x32xf32>, vector<1x32xf32>, vector<1x32xf32>, vector<1x32xf32> -> vector<4x32xf32>
    %c0_2 = arith.constant 0 : index
    %c0_3 = arith.constant 0 : index
    %78 = vector.load %arg3[%c0_2, %c0_3] : memref<4x32xf32, #tpu.memory_space<vmem>>, vector<4x32xf32>
    tpu.vector_store %arg3[%c0_2, %c0_3], %77 {strides = array<i32>} : memref<4x32xf32, #tpu.memory_space<vmem>>, vector<4x32xf32>,
    return
  }
  func.func @transform_0(%arg0: i32) -> i32 {
    %c0_i32 = arith.constant 0 : i32
    %c0_i32_0 = arith.constant 0 : i32
    return %c0_i32 : i32
  }
  func.func @transform_1(%arg0: i32) -> (i32, i32) {
    %c0_i32 = arith.constant 0 : i32
    %c0_i32_0 = arith.constant 0 : i32
    %c0_i32_1 = arith.constant 0 : i32
    return %c0_i32, %c0_i32_0 : i32, i32
  }
  func.func @transform_2(%arg0: i32) -> (i32, i32) {
    %c0_i32 = arith.constant 0 : i32
    %c0_i32_0 = arith.constant 0 : i32
    %c0_i32_1 = arith.constant 0 : i32
    return %c0_i32, %c0_i32_0 : i32, i32
  }
}

</mosaic_0001>

<llo_original>
// kernel: tpu_custom_call.1
$region0: #{tpu_custom_call.1}
  #allocation0 [shape = 'u32[]', space=smem, size = 0x4, offset = 0x4, fixed_abs, tag = 'smem constant byte address 0x4 - core index']
  #allocation1 [shape = 'u32[144,128]{1,0:T(1,128)}', space=vmem, size = 0x12000, scoped, tag = 'internal scratch']
  %s0 = inlined_call_operand.hbm [shape: f32[16], index: 0, kind: input, shape index: {}]
  %s1 = inlined_call_operand.hbm [shape: f32[4,32], index: 1, kind: input, shape index: {}]
  %s2 = inlined_call_operand.hbm [shape: f32[4,32], index: 2, kind: output, shape index: {}]
  %s3 = sld [smem:[#allocation0]]
  $region26: #{tpu_custom_call.1} parent=0
    _
  %s5 = ssub.s32 1, %s3
  %s6 = scalar_select 0, %s5, %s3
  $region1: #{tpu_custom_call.1} parent=0
    #allocation2 [shape = 'u8[512]{0}', space=smem, size = 0x200, scoped, tag = 'input window, operand 0, single buffered']
    #allocation3 [shape = 's32[1]{0}', space=sflag, size = 0x4, scoped, tag = 'scoped memory for tpu_custom_call.1']
    #allocation4 [shape = 's32[1]{0}', space=sflag, size = 0x4, scoped, tag = 'scoped memory for tpu_custom_call.1']
    #allocation5 [shape = 's32[1]{0}', space=sflag, size = 0x4, scoped, tag = 'scoped memory for tpu_custom_call.1']
    #allocation6 [shape = 'u8[2048]{0}', space=vmem, size = 0x800, scoped, tag = 'input window, operand 1, single buffered']
    #allocation7 [shape = 'u8[2048]{0}', space=vmem, size = 0x800, scoped, tag = 'output window, operand 0, single buffered']
    %7 = vsyncpa [#allocation5], 0
    %8 = vsyncpa [#allocation3], 0
    %9 = vsyncpa [#allocation4], 0
    // Predicated region
    $region2: #{tpu_custom_call.1} parent=1 // pred_check
      _
    $region3: #{tpu_custom_call.1} parent=1 // pred_check_branch
      %11 = sbr.rel (0) target = $region5
    $region4: #{tpu_custom_call.1} parent=1 // pred_region
      %s13 = ssub.s32 16, 16
      %14 = vsyncadd [#allocation5], %s13
      %17 = dma.hbm_to_smem %s0, 16, [#allocation2], [#allocation5]
    $region5: #{tpu_custom_call.1} parent=1 // pred_fallthru
      _
    // Predicated region
    $region6: #{tpu_custom_call.1} parent=1 // pred_check
      _
    $region7: #{tpu_custom_call.1} parent=1 // pred_check_branch
      %19 = sbr.rel (0) target = $region9
    $region8: #{tpu_custom_call.1} parent=1 // pred_region
      %s21 = ssub.s32 64, 64
      %22 = vsyncadd [#allocation3], %s21
      %s24 = sshll.u32 [#allocation6], 4
      %s25 = int_to_ptr.vmem [resolvable:$true] %s24
      %27 = dma.hbm_to_vmem [thread:$0]  %s1, 64, %s25, [#allocation3]
    $region9: #{tpu_custom_call.1} parent=1 // pred_fallthru
      _
    // Predicated region
    $region10: #{tpu_custom_call.1} parent=1 // pred_check
      _
    $region11: #{tpu_custom_call.1} parent=1 // pred_check_branch
      %29 = sbr.rel (0) target = $region13
    $region12: #{tpu_custom_call.1} parent=1 // pred_region
      %30 = dma.done [#allocation5], 16
    $region13: #{tpu_custom_call.1} parent=1 // pred_fallthru
      _
    // Predicated region
    $region14: #{tpu_custom_call.1} parent=1 // pred_check
      _
    $region15: #{tpu_custom_call.1} parent=1 // pred_check_branch
      %32 = sbr.rel (0) target = $region17
    $region16: #{tpu_custom_call.1} parent=1 // pred_region
      %33 = dma.done [#allocation3], 64
    $region17: #{tpu_custom_call.1} parent=1 // pred_fallthru
      _
    %34 = sfence
    %v35 = vld [vmem:[#allocation6] sm:$0xf]
    %s36 = sld [smem:[#allocation2]]
    %v37 = vstv %s36
    %v38 = vmul.f32 %v37, %v35
    %s39 = sld [smem:[#allocation2 + $0x1]]
    %v40 = vstv %s39
    %v41 = vmul.f32 %v40, %v35
    %v43 = vrot.slane %v41, 1
    %v45 = vadd.f32 %v38, %v43
    %s46 = sld [smem:[#allocation2 + $0x2]]
    %v47 = vstv %s46
    %v48 = vmul.f32 %v47, %v35
    %v50 = vrot.slane %v48, 2
    %v52 = vadd.f32 %v45, %v50
    %s53 = sld [smem:[#allocation2 + $0x3]]
    %v54 = vstv %s53
    %v55 = vmul.f32 %v54, %v35
    %v57 = vrot.slane %v55, 3
    %v59 = vadd.f32 %v52, %v57
    %s60 = sld [smem:[#allocation2 + $0x4]]
    %v61 = vstv %s60
    %v62 = vmul.f32 %v61, %v35
    %s63 = sld [smem:[#allocation2 + $0x5]]
    %v64 = vstv %s63
    %v65 = vmul.f32 %v64, %v35
    %v67 = vrot.slane %v65, 1
    %v69 = vadd.f32 %v62, %v67
    %s70 = sld [smem:[#allocation2 + $0x6]]
    %v71 = vstv %s70
    %v72 = vmul.f32 %v71, %v35
    %v74 = vrot.slane %v72, 2
    %v76 = vadd.f32 %v69, %v74
    %s77 = sld [smem:[#allocation2 + $0x7]]
    %v78 = vstv %s77
    %v79 = vmul.f32 %v78, %v35
    %v81 = vrot.slane %v79, 3
    %v83 = vadd.f32 %v76, %v81
    %s84 = sld [smem:[#allocation2 + $0x8]]
    %v85 = vstv %s84
    %v86 = vmul.f32 %v85, %v35
    %s87 = sld [smem:[#allocation2 + $0x9]]
    %v88 = vstv %s87
    %v89 = vmul.f32 %v88, %v35
    %v91 = vrot.slane %v89, 1
    %v93 = vadd.f32 %v86, %v91
    %s94 = sld [smem:[#allocation2 + $0xa]]
    %v95 = vstv %s94
    %v96 = vmul.f32 %v95, %v35
    %v98 = vrot.slane %v96, 2
    %v100 = vadd.f32 %v93, %v98
    %s101 = sld [smem:[#allocation2 + $0xb]]
    %v102 = vstv %s101
    %v103 = vmul.f32 %v102, %v35
    %v105 = vrot.slane %v103, 3
    %v107 = vadd.f32 %v100, %v105
    %s108 = sld [smem:[#allocation2 + $0xc]]
    %v109 = vstv %s108
    %v110 = vmul.f32 %v109, %v35
    %s111 = sld [smem:[#allocation2 + $0xd]]
    %v112 = vstv %s111
    %v113 = vmul.f32 %v112, %v35
    %v115 = vrot.slane %v113, 1
    %v117 = vadd.f32 %v110, %v115
    %s118 = sld [smem:[#allocation2 + $0xe]]
    %v119 = vstv %s118
    %v120 = vmul.f32 %v119, %v35
    %v122 = vrot.slane %v120, 2
    %v124 = vadd.f32 %v117, %v122
    %s125 = sld [smem:[#allocation2 + $0xf]]
    %v126 = vstv %s125
    %v127 = vmul.f32 %v126, %v35
    %v129 = vrot.slane %v127, 3
    %v131 = vadd.f32 %v124, %v129
    %v133 = vrot.slane %v83, 7
    %v136 = vrot.slane %v107, 6
    %v139 = vrot.slane %v131, 5
    %vm141 = vcmask 1040384
    %v142 = vsel %vm141, %v59, %v133
    %vm143 = vcmask 1041408
    %v144 = vsel %vm143, %v142, %v136
    %vm145 = vcmask 1042432
    %v146 = vsel %vm145, %v144, %v139
    %vm147 = vcmask 257024
    %148 = vst.msk [vmem:[#allocation7] sm:$0xf] %vm147, %v146
    // Predicated region
    $region18: #{tpu_custom_call.1} parent=1 // pred_check
      _
    $region19: #{tpu_custom_call.1} parent=1 // pred_check_branch
      %150 = sbr.rel (0) target = $region21
    $region20: #{tpu_custom_call.1} parent=1 // pred_region
      %s152 = ssub.s32 64, 64
      %153 = vsyncadd [#allocation4], %s152
      %s155 = sshll.u32 [#allocation7], 4
      %s156 = int_to_ptr.vmem [resolvable:$true] %s155
      %158 = dma.vmem_to_hbm [thread:$0]  %s156, 64, %s2, [#allocation4]
    $region21: #{tpu_custom_call.1} parent=1 // pred_fallthru
      _
    // Predicated region
    $region22: #{tpu_custom_call.1} parent=1 // pred_check
      _
    $region23: #{tpu_custom_call.1} parent=1 // pred_check_branch
      %160 = sbr.rel (0) target = $region25
    $region24: #{tpu_custom_call.1} parent=1 // pred_region
      %161 = dma.done [#allocation4], 64
    $region25: #{tpu_custom_call.1} parent=1 // pred_fallthru
      _
    %162 = vsyncpa [#allocation3], 1
    %163 = vsyncpa [#allocation4], 1
    %164 = vsyncpa [#allocation5], 1

</llo_original>
